<compile_context>
chip_gen: v6e
topology: v6e:2x2x1
jax: 0.10.0
libtpu: 0.0.40
codegen_flags: <defaults>
</compile_context>

<pallas_src>
import functools
import math

import jax
import jax.numpy as jnp
from jax import lax
from jax.experimental import pallas as pl
from jax.experimental.pallas import tpu as pltpu

EPS = 1e-6          # LayerNormalization eps
NEG_INF = -1e9      # masked_fill value used by the torch module


def _round_up(n, m):
    return (n + m - 1) // m * m


def _cdiv(a, b):
    return (a + b - 1) // b


@functools.lru_cache(maxsize=None)
def _vmem_budget():
    """~75% of this generation's physical VMEM (headroom for compiler scratch)."""
    cap = 64 * 1024 * 1024
    try:
        info = pltpu.get_tpu_info()
        cap = int(getattr(info, "vmem_capacity_bytes", cap)) or cap
    except Exception:
        pass
    return (cap * 3) // 4          # v7x ~48 MiB, v5e/v6e ~96 MiB


def _vmem_limit(nbytes, budget):
    return int(max(16 * 1024 * 1024, min(budget, nbytes + (4 << 20))))


def _row_tile(rows, d_in, d_out, has_residual, budget):
    """Largest row tile that fits the VMEM budget; prefer >=2 grid steps so
    both v7x TensorCores get work."""
    fixed = 2 * d_in * d_out * 2 + 2 * d_out * 4                  # bf16 weight (2 bufs) + bias
    per_row = (2 * 2 * (d_in + d_out + (d_out if has_residual else 0))   # bf16 HBM tiles (2 bufs)
               + 4 * (d_in + 2 * d_out))                                 # f32 in-kernel working set
    tile = 8
    for t in (1024, 512, 256, 128, 64, 32, 16, 8):
        if fixed + t * per_row > budget * 3 // 4:
            continue
        if t > 8 and t >= 2 * _round_up(rows, 8):
            continue                       # don't pad away >50% of the rows
        tile = t
        break
    while tile > 8 and _cdiv(rows, tile) < 2:
        tile //= 2                         # expose >=2 parallel grid steps
    return tile


# ---------------------------------------------------------------------------
# Fused (layernorm?) -> matmul -> bias -> (relu?) -> (dropout?) -> (residual?)
# ---------------------------------------------------------------------------
def _fused_linear_kernel(alpha_ref, beta_ref, seed_ref, x_ref, w_ref, b_ref,
                         *rest, apply_norm, apply_relu, has_residual, p,
                         training):
    res_ref = rest[0] if has_residual else None
    o_ref = rest[-1]

    x = x_ref[...].astype(jnp.float32)                      # (tile_r, d_in)

    if apply_norm:
        d = x.shape[-1]
        mean = jnp.mean(x, axis=-1, keepdims=True)
        var = jnp.sum((x - mean) ** 2, axis=-1, keepdims=True) * (1.0 / (d - 1))
        std = jnp.sqrt(var)                                  # torch unbiased std
        # exact division for the LN path (correctness feedback)
        x = alpha_ref[0] * (x - mean) / (std + EPS) + beta_ref[0]

    # bf16 operands, f32 accumulation on the MXU.
    y = jnp.dot(x.astype(jnp.bfloat16), w_ref[...],
                preferred_element_type=jnp.float32)
    y = y + b_ref[...].astype(jnp.float32)

    if apply_relu:
        y = jnp.maximum(y, 0.0)

    if training and p > 0.0:
        # TODO(synk): TPU PRNG stream cannot bitwise-match torch's dropout RNG.
        pltpu.prng_seed(seed_ref[0] + pl.program_id(0))
        bits = pltpu.bitcast(pltpu.prng_random_bits(y.shape), jnp.uint32)
        thresh = jnp.uint32(min(int(p * 4294967296.0), 4294967295))
        y = jnp.where(bits >= thresh, y * (1.0 / (1.0 - p)), 0.0)

    if has_residual:
        y = y + res_ref[...].astype(jnp.float32)

    o_ref[...] = y.astype(o_ref.dtype)


def fused_linear(x2d, w, b, alpha=None, beta=None, residual=None, *,
                 apply_norm=False, apply_relu=False, dropout_p=0.0,
                 training=False, seed=0, out_dtype=jnp.bfloat16):
    """y = [residual +] [dropout] [relu] ( [LN](x2d) @ w + b ), row-tiled.

    x2d / residual are bf16 activations; w is a pre-cast bf16 weight.
    # TODO(synk): add K/N grid axes + f32 accumulator for weights that do not
    # fit VMEM (realistic d_model >= 2048); full weight is VMEM-resident here.
    # TODO(synk): mark the grid-invariant weight/bias with pl.Buffered(1) to
    # drop their second pipeline buffer once that path is settled.
    """
    rows, d_in = x2d.shape
    d_out = w.shape[1]
    has_residual = residual is not None
    budget = _vmem_budget()

    x2d = x2d.astype(jnp.bfloat16)
    w = w.astype(jnp.bfloat16)
    if has_residual:
        residual = residual.astype(jnp.bfloat16)

    tile_r = _row_tile(rows, d_in, d_out, has_residual, budget)
    padded = _round_up(rows, tile_r)
    if padded != rows:
        # Padded rows go through LN with zero variance; they are sliced off
        # below and never feed any cross-row reduction.
        x2d = jnp.pad(x2d, ((0, padded - rows), (0, 0)))
        if has_residual:
            residual = jnp.pad(residual, ((0, padded - rows), (0, 0)))
    grid = (padded // tile_r,)

    if alpha is None:
        alpha = jnp.ones((1,), jnp.float32)
    if beta is None:
        beta = jnp.zeros((1,), jnp.float32)

    kernel = functools.partial(
        _fused_linear_kernel, apply_norm=apply_norm, apply_relu=apply_relu,
        has_residual=has_residual, p=float(dropout_p), training=bool(training))

    in_specs = [
        pl.BlockSpec(memory_space=pltpu.MemorySpace.SMEM),   # alpha (scalar)
        pl.BlockSpec(memory_space=pltpu.MemorySpace.SMEM),   # beta (scalar)
        pl.BlockSpec(memory_space=pltpu.MemorySpace.SMEM),   # dropout seed
        pl.BlockSpec((tile_r, d_in), lambda i: (i, 0)),      # activation rows (bf16)
        pl.BlockSpec((d_in, d_out), lambda i: (0, 0)),       # weight (bf16, grid-invariant)
        pl.BlockSpec((1, d_out), lambda i: (0, 0)),          # bias (f32)
    ]
    args = [alpha, beta, jnp.asarray([seed], jnp.int32), x2d, w, b]
    if has_residual:
        in_specs.append(pl.BlockSpec((tile_r, d_out), lambda i: (i, 0)))
        args.append(residual)

    tile_bytes = (2 * tile_r * d_in * 2 + 2 * tile_r * d_out * 2
                  + 2 * d_in * d_out * 2 + 2 * d_out * 4
                  + (2 * tile_r * d_out * 2 if has_residual else 0)
                  + 4 * tile_r * (d_in + 2 * d_out))
    cost = pl.CostEstimate(
        flops=int(2 * padded * d_in * d_out),
        transcendentals=0,
        bytes_accessed=int(padded * d_in * 2 + d_in * d_out * 2 + d_out * 4
                           + padded * d_out * 2
                           + (padded * d_out * 2 if has_residual else 0)))

    out = pl.pallas_call(
        kernel,
        out_shape=jax.ShapeDtypeStruct((padded, d_out), out_dtype),
        grid=grid,
        in_specs=in_specs,
        out_specs=pl.BlockSpec((tile_r, d_out), lambda i: (i, 0)),
        compiler_params=pltpu.CompilerParams(
            dimension_semantics=("parallel",),
            vmem_limit_bytes=_vmem_limit(tile_bytes, budget)),
        cost_estimate=cost,
    )(*args)
    return out[:rows]


# ---------------------------------------------------------------------------
# Scaled dot-product attention: one batch (ALL heads) per grid step.
# q/k/v come as d_model-wide lane-blocks of (possibly shared) projection
# arrays; output is one lane-dense (Sq, d_model) block with heads merged.
# ---------------------------------------------------------------------------
def _attention_kernel(seed_ref, q_ref, k_ref, v_ref, m_ref, o_ref, *,
                      h, scale, p, training):
    Sq, D = q_ref.shape
    dk = D // h
    q = q_ref[...].astype(jnp.bfloat16)                      # (Sq, D)
    k = k_ref[...].astype(jnp.bfloat16)                      # (Sk, D)
    v = v_ref[...].astype(jnp.bfloat16)                      # (Sk, D)
    mask0 = m_ref[...] == 0                                  # (Sq, Sk) int8 -> bool

    if training and p > 0.0:
        # TODO(synk): TPU PRNG stream cannot bitwise-match torch's dropout RNG.
        pltpu.prng_seed(seed_ref[0] + pl.program_id(0))
        thresh = jnp.uint32(min(int(p * 4294967296.0), 4294967295))

    outs = []
    for hh in range(h):                                      # static unroll over heads
        cols = slice(hh * dk, (hh + 1) * dk)
        s = lax.dot_general(q[:, cols], k[:, cols],
                            (((1,), (1,)), ((), ())),
                            preferred_element_type=jnp.float32) * scale
        s = jnp.where(mask0, NEG_INF, s)
        s_max = jnp.max(s, axis=-1, keepdims=True)
        e = jnp.exp(s - s_max)
        denom = jnp.sum(e, axis=-1, keepdims=True)
        attn = e * pl.reciprocal(denom, approx=True)         # divide -> EUP slot
        if training and p > 0.0:
            bits = pltpu.bitcast(pltpu.prng_random_bits(attn.shape), jnp.uint32)
            attn = jnp.where(bits >= thresh, attn * (1.0 / (1.0 - p)), 0.0)
        outs.append(jnp.dot(attn.astype(jnp.bfloat16), v[:, cols],
                            preferred_element_type=jnp.float32))

    o_ref[...] = jnp.concatenate(outs, axis=-1).astype(o_ref.dtype)


def attention(q_arr, k_arr, v_arr, mask, *, d_model, h, q_col=0, k_col=0,
              v_col=0, dropout_p=0.0, training=False, seed=0):
    """q_arr: (B, Sq, Wq) with the query projection at lane-block column q_col
    (element offset q_col*d_model); k_arr/v_arr likewise (they may alias
    q_arr, e.g. a fused QKV projection).  Returns (B, Sq, d_model) bf16 with
    heads already merged row-major (no transposes needed afterwards).
    # TODO(synk): add Sq tiling + flash-style online softmax over Sk for long
    # sequences; the full (Sq, Sk) score matrix is materialized per head here.
    """
    B, Sq, _ = q_arr.shape
    Sk = k_arr.shape[1]
    dk = d_model // h
    scale = 1.0 / math.sqrt(dk)
    budget = _vmem_budget()

    if mask.ndim < 4:
        mask = mask.reshape((1,) * (4 - mask.ndim) + mask.shape)
    # int8, and never materialize B broadcast copies: index_map picks batch 0.
    mask = jnp.broadcast_to(mask, (mask.shape[0], 1, Sq, Sk)).astype(jnp.int8)
    if mask.shape[0] > 1:
        mask_map = lambda b: (b, 0, 0, 0)
    else:
        mask_map = lambda b: (0, 0, 0, 0)

    kernel = functools.partial(_attention_kernel, h=h, scale=scale,
                               p=float(dropout_p), training=bool(training))

    bytes_needed = (2 * (Sq + 2 * Sk) * d_model * 2      # q/k/v bf16, double-buffered
                    + 2 * Sq * d_model * 2               # output bf16
                    + 2 * Sq * Sk                        # int8 mask
                    + 8 * Sq * max(Sk, d_model) * 4)     # f32 score/softmax working set
    cost = pl.CostEstimate(
        flops=int(4 * B * Sq * Sk * d_model),
        transcendentals=int(B * h * Sq * Sk),
        bytes_accessed=int(B * (Sq + 2 * Sk) * d_model * 2 + mask.size
                           + B * Sq * d_model * 2))

    out = pl.pallas_call(
        kernel,
        out_shape=jax.ShapeDtypeStruct((B, Sq, d_model), jnp.bfloat16),
        grid=(B,),
        in_specs=[
            pl.BlockSpec(memory_space=pltpu.MemorySpace.SMEM),                  # seed
            pl.BlockSpec((None, Sq, d_model), lambda b: (b, 0, q_col)),         # q slab
            pl.BlockSpec((None, Sk, d_model), lambda b: (b, 0, k_col)),         # k slab
            pl.BlockSpec((None, Sk, d_model), lambda b: (b, 0, v_col)),         # v slab
            pl.BlockSpec((None, None, Sq, Sk), mask_map),                       # int8 mask
        ],
        out_specs=pl.BlockSpec((None, Sq, d_model), lambda b: (b, 0, 0)),
        compiler_params=pltpu.CompilerParams(
            dimension_semantics=("parallel",),
            vmem_limit_bytes=_vmem_limit(bytes_needed, budget)),
        cost_estimate=cost,
    )(jnp.asarray([seed], jnp.int32), q_arr, k_arr, v_arr, mask)
    return out


# ---------------------------------------------------------------------------
# Parameter preparation (hoisted out of the per-step path)
# ---------------------------------------------------------------------------
def prepare_params(prm):
    """Concatenate fused projection weights (QKV / KV) and pre-cast everything
    feeding the MXU to bf16 once, instead of per pallas_call."""
    bf = lambda a: a.astype(jnp.bfloat16)
    f32 = lambda a: a.astype(jnp.float32)
    p = {}
    p['sa_wqkv'] = bf(jnp.concatenate([prm['sa_wq'], prm['sa_wk'], prm['sa_wv']], axis=1))
    p['sa_bqkv'] = f32(jnp.concatenate([prm['sa_bq'], prm['sa_bk'], prm['sa_bv']], axis=1))
    p['sa_wo'], p['sa_bo'] = bf(prm['sa_wo']), f32(prm['sa_bo'])
    p['ca_wq'], p['ca_bq'] = bf(prm['ca_wq']), f32(prm['ca_bq'])
    p['ca_wkv'] = bf(jnp.concatenate([prm['ca_wk'], prm['ca_wv']], axis=1))
    p['ca_bkv'] = f32(jnp.concatenate([prm['ca_bk'], prm['ca_bv']], axis=1))
    p['ca_wo'], p['ca_bo'] = bf(prm['ca_wo']), f32(prm['ca_bo'])
    p['ff_w1'], p['ff_b1'] = bf(prm['ff_w1']), f32(prm['ff_b1'])
    p['ff_w2'], p['ff_b2'] = bf(prm['ff_w2']), f32(prm['ff_b2'])
    for i in range(3):
        p[f'alpha{i}'] = f32(prm[f'alpha{i}']).reshape(1)
        p[f'beta{i}'] = f32(prm[f'beta{i}']).reshape(1)
    return p


# ---------------------------------------------------------------------------
# DecoderBlock forward
# ---------------------------------------------------------------------------
def decoder_block(x, encoder_output, src_mask, tgt_mask, p, *, h,
                  dropout_p=0.1, training=False, seed=0):
    """x, encoder_output: [B, S, D]; masks broadcastable to [*, 1, Sq, Sk].
    `p` are prepare_params() outputs."""
    B, S, D = x.shape
    Se = encoder_output.shape[1]
    lane_ok = (D % 128 == 0)     # column-block specs need lane-aligned offsets

    # Activations are carried in bf16 between kernels (f32 inside kernels only).
    x_rows = x.reshape(B * S, D).astype(jnp.bfloat16)
    enc_rows = encoder_output.reshape(B * Se, D).astype(jnp.bfloat16)

    # Hoisted: the cross-attention K/V projection of the encoder output is
    # independent of the self-attention chain (overlappable / cacheable).
    enc_kv = fused_linear(enc_rows, p['ca_wkv'], p['ca_bkv'])           # (B*Se, 2D)

    # --- residual connection 0: masked self-attention -----------------------
    qkv = fused_linear(x_rows, p['sa_wqkv'], p['sa_bqkv'],
                       p['alpha0'], p['beta0'], apply_norm=True)        # (B*S, 3D)
    if lane_ok:
        qkv3 = qkv.reshape(B, S, 3 * D)                                 # free reshape
        attn = attention(qkv3, qkv3, qkv3, tgt_mask, q_col=0, k_col=1, v_col=2,
                         d_model=D, h=h, dropout_p=dropout_p,
                         training=training, seed=seed)
    else:
        # TODO(synk): D not a multiple of 128 -> fall back to XLA column slices
        # (no transposes, just three contiguous copies).
        q3 = qkv[:, :D].reshape(B, S, D)
        k3 = qkv[:, D:2 * D].reshape(B, S, D)
        v3 = qkv[:, 2 * D:].reshape(B, S, D)
        attn = attention(q3, k3, v3, tgt_mask, d_model=D, h=h,
                         dropout_p=dropout_p, training=training, seed=seed)
    x_rows = fused_linear(attn.reshape(B * S, D), p['sa_wo'], p['sa_bo'],
                          residual=x_rows, dropout_p=dropout_p,
                          training=training, seed=seed + 1)

    # --- residual connection 1: cross-attention over the encoder output -----
    q_proj = fused_linear(x_rows, p['ca_wq'], p['ca_bq'],
                          p['alpha1'], p['beta1'], apply_norm=True)     # (B*S, D)
    if lane_ok:
        kv3 = enc_kv.reshape(B, Se, 2 * D)
        attn = attention(q_proj.reshape(B, S, D), kv3, kv3, src_mask,
                         q_col=0, k_col=0, v_col=1, d_model=D, h=h,
                         dropout_p=dropout_p, training=training, seed=seed + 100)
    else:
        k3 = enc_kv[:, :D].reshape(B, Se, D)
        v3 = enc_kv[:, D:].reshape(B, Se, D)
        attn = attention(q_proj.reshape(B, S, D), k3, v3, src_mask,
                         d_model=D, h=h, dropout_p=dropout_p,
                         training=training, seed=seed + 100)
    x_rows = fused_linear(attn.reshape(B * S, D), p['ca_wo'], p['ca_bo'],
                          residual=x_rows, dropout_p=dropout_p,
                          training=training, seed=seed + 101)

    # --- residual connection 2: feed-forward block ---------------------------
    hidden = fused_linear(x_rows, p['ff_w1'], p['ff_b1'],
                          p['alpha2'], p['beta2'], apply_norm=True,
                          apply_relu=True, dropout_p=dropout_p,
                          training=training, seed=seed + 200)
    x_rows = fused_linear(hidden, p['ff_w2'], p['ff_b2'],
                          residual=x_rows, dropout_p=dropout_p,
                          training=training, seed=seed + 201)

    return x_rows.reshape(B, S, D).astype(x.dtype)


# ---------------------------------------------------------------------------
# Pure-JAX reference (eval mode), mirroring the bf16 MXU strategy
# ---------------------------------------------------------------------------
def _ref_norm(x, alpha, beta):
    mean = x.mean(-1, keepdims=True)
    var = ((x - mean) ** 2).sum(-1, keepdims=True) / (x.shape[-1] - 1)
    return alpha * (x - mean) / (jnp.sqrt(var) + EPS) + beta


def _ref_linear(x, w, b):
    return jnp.dot(x.astype(jnp.bfloat16), w.astype(jnp.bfloat16),
                   preferred_element_type=jnp.float32) + b.astype(jnp.float32)


def _ref_mha(q_in, k_in, v_in, mask, prm, prefix, h):
    B, Sq, D = q_in.shape
    Sk = k_in.shape[1]
    dk = D // h
    q = _ref_linear(q_in, prm[prefix + 'wq'], prm[prefix + 'bq'])
    k = _ref_linear(k_in, prm[prefix + 'wk'], prm[prefix + 'bk'])
    v = _ref_linear(v_in, prm[prefix + 'wv'], prm[prefix + 'bv'])
    q = q.reshape(B, Sq, h, dk).transpose(0, 2, 1, 3)
    k = k.reshape(B, Sk, h, dk).transpose(0, 2, 1, 3)
    v = v.reshape(B, Sk, h, dk).transpose(0, 2, 1, 3)
    s = jnp.einsum('bhqd,bhkd->bhqk', q.astype(jnp.bfloat16),
                   k.astype(jnp.bfloat16),
                   preferred_element_type=jnp.float32) / math.sqrt(dk)
    s = jnp.where(mask == 0, NEG_INF, s)
    a = jax.nn.softmax(s, axis=-1)
    o = jnp.einsum('bhqk,bhkd->bhqd', a.astype(jnp.bfloat16),
                   v.astype(jnp.bfloat16),
                   preferred_element_type=jnp.float32)
    o = o.transpose(0, 2, 1, 3).reshape(B, Sq, D)
    return _ref_linear(o, prm[prefix + 'wo'], prm[prefix + 'bo'])


def _ref_decoder_block(x, enc, src_mask, tgt_mask, prm, h):
    x = x.astype(jnp.float32)
    enc = enc.astype(jnp.float32)
    n = _ref_norm(x, prm['alpha0'], prm['beta0'])
    x = x + _ref_mha(n, n, n, tgt_mask, prm, 'sa_', h)
    n = _ref_norm(x, prm['alpha1'], prm['beta1'])
    x = x + _ref_mha(n, enc, enc, src_mask, prm, 'ca_', h)
    n = _ref_norm(x, prm['alpha2'], prm['beta2'])
    hdn = jnp.maximum(_ref_linear(n, prm['ff_w1'], prm['ff_b1']), 0.0)
    x = x + _ref_linear(hdn, prm['ff_w2'], prm['ff_b2'])
    return x


if __name__ == "__main__":
    key = jax.random.PRNGKey(0)
    B, S, D, H, D_FF = 2, 8, 128, 4, 256       # D multiple of 128 -> lane-aligned fast path
    P_DROP = 0.1

    keys = jax.random.split(key, 4)
    x = jax.random.normal(keys[0], (B, S, D), dtype=jnp.float32)
    enc = jax.random.normal(keys[1], (B, S, D), dtype=jnp.float32)

    tgt_mask = jnp.tril(jnp.ones((S, S), jnp.int32))[None, None]   # causal
    src_mask = jnp.ones((1, 1, S, S), jnp.int32)

    def lin(kw, kb, din, dout):
        w = jax.random.normal(kw, (din, dout), jnp.float32) * 0.05
        b = jax.random.normal(kb, (1, dout), jnp.float32) * 0.05
        return w, b

    prm = {}
    ki = iter(jax.random.split(keys[2], 40))
    for pre in ('sa_', 'ca_'):
        for name in ('wq', 'wk', 'wv', 'wo'):
            w, b = lin(next(ki), next(ki), D, D)
            prm[pre + name] = w
            prm[pre + 'b' + name[1]] = b
    prm['ff_w1'], prm['ff_b1'] = lin(next(ki), next(ki), D, D_FF)
    prm['ff_w2'], prm['ff_b2'] = lin(next(ki), next(ki), D_FF, D)
    for i in range(3):
        prm[f'alpha{i}'] = jnp.ones((1,), jnp.float32)   # torch.ones(1)
        prm[f'beta{i}'] = jnp.zeros((1,), jnp.float32)   # torch.zeros(1)

    params = prepare_params(prm)

    out = decoder_block(x, enc, src_mask, tgt_mask, params, h=H,
                        dropout_p=P_DROP, training=False)   # eval: dropout = id
    out = jax.block_until_ready(out)

    ref = _ref_decoder_block(x, enc, src_mask, tgt_mask, prm, H)
    assert out.shape == (B, S, D)
    max_err = jnp.max(jnp.abs(out.astype(jnp.float32) - ref))
    assert jnp.allclose(out.astype(jnp.float32), ref, atol=4e-2, rtol=4e-2), (
        f"mismatch vs reference (max abs err {max_err})")

    print("KERNEL_OK")
</pallas_src>

<mosaic_0001>
module attributes {stable_mosaic.version = 11 : i64} {
  func.func @_fused_linear_kernel(%arg0: i32, %arg1: memref<1xf32, #tpu.memory_space<smem>>, %arg2: memref<1xf32, #tpu.memory_space<smem>>, %arg3: memref<1xi32, #tpu.memory_space<smem>>, %arg4: memref<8x128xbf16, #tpu.memory_space<vmem>>, %arg5: memref<128x256xbf16, #tpu.memory_space<vmem>>, %arg6: memref<1x256xf32, #tpu.memory_space<vmem>>, %arg7: memref<8x256xbf16, #tpu.memory_space<vmem>>) attributes {dimension_semantics = [#tpu.dimension_semantics<parallel>], iteration_bounds = array<i64: 2>, scalar_prefetch = 0 : i64, scratch_operands = 0 : i64, tpu.core_type = #tpu.core_type<tc>, window_params = [{transform_indices = @transform_0, window_bounds = array<i64: 1>}, {transform_indices = @transform_1, window_bounds = array<i64: 1>}, {transform_indices = @transform_2, window_bounds = array<i64: 1>}, {transform_indices = @transform_3, window_bounds = array<i64: 8, 128>}, {pipeline_mode = #tpu.pipeline_mode<synchronous>, transform_indices = @transform_4, window_bounds = array<i64: 128, 256>}, {pipeline_mode = #tpu.pipeline_mode<synchronous>, transform_indices = @transform_5, window_bounds = array<i64: 1, 256>}, {transform_indices = @transform_6, window_bounds = array<i64: 8, 256>}]} {
    %c0 = arith.constant 0 : index
    %c0_0 = arith.constant 0 : index
    %0 = vector.load %arg4[%c0, %c0_0] : memref<8x128xbf16, #tpu.memory_space<vmem>>, vector<8x128xbf16>
    %1 = arith.extf %0 : vector<8x128xbf16> to vector<8x128xf32>
    %2 = arith.truncf %1 : vector<8x128xf32> to vector<8x128xbf16>
    %c0_1 = arith.constant 0 : index
    %c0_2 = arith.constant 0 : index
    %3 = vector.load %arg5[%c0_1, %c0_2] : memref<128x256xbf16, #tpu.memory_space<vmem>>, vector<128x256xbf16>
    %cst = arith.constant dense<0.000000e+00> : vector<8x256xf32>
    %4 = tpu.matmul %2, %3, %cst {dimension_numbers = #tpu.dot_dimension_numbers<[1], [0], [0], [1], [0, 0, 1, 1], [], []>} : vector<8x128xbf16>, vector<128x256xbf16>, vector<8x256xf32> -> vector<8x256xf32>
    %c0_3 = arith.constant 0 : index
    %c0_4 = arith.constant 0 : index
    %5 = vector.load %arg6[%c0_3, %c0_4] : memref<1x256xf32, #tpu.memory_space<vmem>>, vector<1x256xf32>
    %6 = vector.broadcast %5 : vector<1x256xf32> to vector<8x256xf32>
    %7 = arith.addf %4, %6 : vector<8x256xf32>
    %8 = arith.truncf %7 : vector<8x256xf32> to vector<8x256xbf16>
    %c0_5 = arith.constant 0 : index
    %c0_6 = arith.constant 0 : index
    %9 = vector.load %arg7[%c0_5, %c0_6] : memref<8x256xbf16, #tpu.memory_space<vmem>>, vector<8x256xbf16>
    tpu.vector_store %arg7[%c0_5, %c0_6], %8 {strides = array<i32>} : memref<8x256xbf16, #tpu.memory_space<vmem>>, vector<8x256xbf16>,
    return
  }
  func.func @transform_0(%arg0: i32) -> i32 {
    %c0_i32 = arith.constant 0 : i32
    %c0_i32_0 = arith.constant 0 : i32
    return %c0_i32 : i32
  }
  func.func @transform_1(%arg0: i32) -> i32 {
    %c0_i32 = arith.constant 0 : i32
    %c0_i32_0 = arith.constant 0 : i32
    return %c0_i32 : i32
  }
  func.func @transform_2(%arg0: i32) -> i32 {
    %c0_i32 = arith.constant 0 : i32
    %c0_i32_0 = arith.constant 0 : i32
    return %c0_i32 : i32
  }
  func.func @transform_3(%arg0: i32) -> (i32, i32) {
    %c0_i32 = arith.constant 0 : i32
    %c0_i32_0 = arith.constant 0 : i32
    return %arg0, %c0_i32 : i32, i32
  }
  func.func @transform_4(%arg0: i32) -> (i32, i32) {
    %c0_i32 = arith.constant 0 : i32
    %c0_i32_0 = arith.constant 0 : i32
    %c0_i32_1 = arith.constant 0 : i32
    return %c0_i32, %c0_i32_0 : i32, i32
  }
  func.func @transform_5(%arg0: i32) -> (i32, i32) {
    %c0_i32 = arith.constant 0 : i32
    %c0_i32_0 = arith.constant 0 : i32
    %c0_i32_1 = arith.constant 0 : i32
    return %c0_i32, %c0_i32_0 : i32, i32
  }
  func.func @transform_6(%arg0: i32) -> (i32, i32) {
    %c0_i32 = arith.constant 0 : i32
    %c0_i32_0 = arith.constant 0 : i32
    return %arg0, %c0_i32 : i32, i32
  }
}

</mosaic_0001>

<llo_original>
// kernel: tpu_custom_call.1
$region0: #{tpu_custom_call.1}
  #allocation0 [shape = 'u32[]', space=smem, size = 0x4, offset = 0x4, fixed_abs, tag = 'smem constant byte address 0x4 - core index']
  #allocation1 [shape = 'u32[144,128]{1,0:T(1,128)}', space=vmem, size = 0x12000, scoped, tag = 'internal scratch']
  #allocation2 [shape = 'f32[1]{0:T(128)S(6)}', space=smem, size = 0x200, scoped, tag = 'scoped memory for tpu_custom_call.1']
  #allocation3 [shape = 'f32[1]{0:T(128)S(6)}', space=smem, size = 0x200, scoped, tag = 'scoped memory for tpu_custom_call.1']
  #allocation4 [shape = 's32[1]{0:T(128)S(6)}', space=smem, size = 0x200, scoped, tag = 'scoped memory for tpu_custom_call.1']
  %s0 = inlined_call_operand.<no memory space> [shape: f32[1], index: 0, kind: input, shape index: {}]
  %s1 = inlined_call_operand.<no memory space> [shape: f32[1], index: 1, kind: input, shape index: {}]
  %s2 = inlined_call_operand.<no memory space> [shape: s32[1], index: 2, kind: input, shape index: {}]
  %s3 = inlined_call_operand.hbm [shape: bf16[16,128], index: 3, kind: input, shape index: {}]
  %s4 = inlined_call_operand.hbm [shape: bf16[128,256], index: 4, kind: input, shape index: {}]
  %s5 = inlined_call_operand.vmem [shape: f32[1,256], index: 5, kind: input, shape index: {}]
  %s6 = inlined_call_operand.hbm [shape: bf16[16,256], index: 6, kind: output, shape index: {}]
  %s7 = sld [smem:[#allocation0]]
  $region65: #{tpu_custom_call.1} parent=0
    _
  %s9 = ssub.s32 1, %s7
  %s10 = scalar_select 0, %s9, %s7
  %11 = sst [smem:[#allocation2]] %s0
  %12 = sst [smem:[#allocation3]] %s1
  %13 = sst [smem:[#allocation4]] %s2
  $region1: #{tpu_custom_call.1} parent=0
    #allocation5 [shape = 'u8[4096]{0}', space=vmem, size = 0x1000, scoped, tag = 'input window, operand 3']
    #allocation6 [shape = 's32[2]{0}', space=sflag, size = 0x8, scoped, tag = 'scoped memory for tpu_custom_call.1']
    #allocation7 [shape = 's32[2]{0}', space=sflag, size = 0x8, scoped, tag = 'scoped memory for tpu_custom_call.1']
    #allocation8 [shape = 'u8[65536]{0}', space=vmem, size = 0x10000, scoped, tag = 'input window, operand 4, single buffered']
    #allocation9 [shape = 's32[1]{0}', space=sflag, size = 0x4, scoped, tag = 'scoped memory for tpu_custom_call.1']
    #allocation10 [shape = 'u8[8192]{0}', space=vmem, size = 0x2000, scoped, tag = 'output window, operand 0']
    %14 = vsyncpa [#allocation6], 0
    %s15 = scalar_lea.sflag [#allocation6], 1
    %16 = vsyncpa %s15, 0
    %17 = vsyncpa [#allocation9], 0
    %18 = vsyncpa [#allocation7], 0
    %s19 = scalar_lea.sflag [#allocation7], 1
    %20 = vsyncpa %s19, 0
    loop: start=0, step=1, limit=4
    $region2: #{tpu_custom_call.1} parent=1 // loop_pre_header
      _
    $region3: #{tpu_custom_call.1} parent=1 // loop_header
      %s22 = sphi 0, %s26
      %p23 = scmp.ge.s32.totalorder %s22, 4
      %s30 = sphi 0, %s30
      %s32 = sphi 0, %s30
      %s33 = sphi 0, %s32
      %s47 = sphi 0, %s33
      %s51 = sphi 0, %s51
      %s53 = sphi 0, %s51
      %s54 = sphi 0, %s53
      %s68 = sphi 0, %s54
      %s72 = sphi 0, %s72
      %s74 = sphi 0, %s72
      %s75 = sphi 0, %s74
      %s89 = sphi 0, %s75
      %s95 = sphi 0, %s97
      %s98 = sphi 0, %s95
      %s99 = sphi 0, %s98
      %s115 = sphi 0, %s99
      %s119 = sphi 0, %s119
      %s121 = sphi 0, %s119
      %s122 = sphi 0, %s121
      %s136 = sphi 0, %s122
      %s140 = sphi 0, %s140
      %s142 = sphi 0, %s140
      %s143 = sphi 0, %s142
      %s157 = sphi 0, %s143
      %s163 = sphi 0, %s165
      %s166 = sphi 0, %s163
      %s167 = sphi 0, %s166
      %s183 = sphi 0, %s167
    $region4: #{tpu_custom_call.1} parent=1 // loop_header_branch
      %25 = sbr.rel (%p23) target = $region8
    $region5: #{tpu_custom_call.1} parent=1 // loop_body
      %s27 = ssub.s32 %s22, 1
      %s28 = ssub.s32 %s22, 2
      %s29 = sadd.s32 %s22, 1
      %s31 = sadd.s32 %s30, 1
      %p34 = scmp.eq.s32.totalorder %s22, 1
      %p35 = scmp.ne.s32.totalorder %s30, %s32
      %p36 = scmp.eq.s32.totalorder %s22, 0
      %p37 = por %p35, %p36
      %p38 = scmp.ne.s32.totalorder %s30, %s32
      %p39 = scmp.eq.s32.totalorder %s27, 1
      %p40 = por %p38, %p39
      %p41 = scmp.ne.s32.totalorder %s32, %s33
      %p42 = scmp.eq.s32.totalorder %s27, 0
      %p43 = por %p41, %p42
      %p44 = scmp.ne.s32.totalorder %s32, %s33
      %p45 = scmp.eq.s32.totalorder %s28, 1
      %p46 = por %p44, %p45
      %p48 = scmp.ne.s32.totalorder %s33, %s47
      %p49 = scmp.eq.s32.totalorder %s28, 0
      %p50 = por %p48, %p49
      %s52 = sadd.s32 %s51, 1
      %p55 = scmp.eq.s32.totalorder %s22, 1
      %p56 = scmp.ne.s32.totalorder %s51, %s53
      %p57 = scmp.eq.s32.totalorder %s22, 0
      %p58 = por %p56, %p57
      %p59 = scmp.ne.s32.totalorder %s51, %s53
      %p60 = scmp.eq.s32.totalorder %s27, 1
      %p61 = por %p59, %p60
      %p62 = scmp.ne.s32.totalorder %s53, %s54
      %p63 = scmp.eq.s32.totalorder %s27, 0
      %p64 = por %p62, %p63
      %p65 = scmp.ne.s32.totalorder %s53, %s54
      %p66 = scmp.eq.s32.totalorder %s28, 1
      %p67 = por %p65, %p66
      %p69 = scmp.ne.s32.totalorder %s54, %s68
      %p70 = scmp.eq.s32.totalorder %s28, 0
      %p71 = por %p69, %p70
      %s73 = sadd.s32 %s72, 1
      %p76 = scmp.eq.s32.totalorder %s22, 1
      %p77 = scmp.ne.s32.totalorder %s72, %s74
      %p78 = scmp.eq.s32.totalorder %s22, 0
      %p79 = por %p77, %p78
      %p80 = scmp.ne.s32.totalorder %s72, %s74
      %p81 = scmp.eq.s32.totalorder %s27, 1
      %p82 = por %p80, %p81
      %p83 = scmp.ne.s32.totalorder %s74, %s75
      %p84 = scmp.eq.s32.totalorder %s27, 0
      %p85 = por %p83, %p84
      %p86 = scmp.ne.s32.totalorder %s74, %s75
      %p87 = scmp.eq.s32.totalorder %s28, 1
      %p88 = por %p86, %p87
      %p90 = scmp.ne.s32.totalorder %s75, %s89
      %p91 = scmp.eq.s32.totalorder %s28, 0
      %p92 = por %p90, %p91
      %s93 = ssub.s32 %s22, %s29
      %p94 = scmp.eq.s32.totalorder %s93, 0
      %s96 = sadd.s32 %s95, 1
      %s97 = scalar_select %p94, %s95, %s96
      %p100 = pneg %p94
      %p101 = scmp.eq.s32.totalorder %s22, 1
      %p102 = por %p100, %p101
      %p103 = scmp.ne.s32.totalorder %s95, %s98
      %p104 = scmp.eq.s32.totalorder %s22, 0
      %p105 = por %p103, %p104
      %p106 = scmp.ne.s32.totalorder %s95, %s98
      %p107 = scmp.eq.s32.totalorder %s27, 1
      %p108 = por %p106, %p107
      %p109 = scmp.ne.s32.totalorder %s98, %s99
      %p110 = scmp.eq.s32.totalorder %s27, 0
      %p111 = por %p109, %p110
      %p112 = scmp.ne.s32.totalorder %s98, %s99
      %p113 = scmp.eq.s32.totalorder %s28, 1
      %p114 = por %p112, %p113
      %p116 = scmp.ne.s32.totalorder %s99, %s115
      %p117 = scmp.eq.s32.totalorder %s28, 0
      %p118 = por %p116, %p117
      %s120 = sadd.s32 %s119, 1
      %p123 = scmp.eq.s32.totalorder %s22, 1
      %p124 = scmp.ne.s32.totalorder %s119, %s121
      %p125 = scmp.eq.s32.totalorder %s22, 0
      %p126 = por %p124, %p125
      %p127 = scmp.ne.s32.totalorder %s119, %s121
      %p128 = scmp.eq.s32.totalorder %s27, 1
      %p129 = por %p127, %p128
      %p130 = scmp.ne.s32.totalorder %s121, %s122
      %p131 = scmp.eq.s32.totalorder %s27, 0
      %p132 = por %p130, %p131
      %p133 = scmp.ne.s32.totalorder %s121, %s122
      %p134 = scmp.eq.s32.totalorder %s28, 1
      %p135 = por %p133, %p134
      %p137 = scmp.ne.s32.totalorder %s122, %s136
      %p138 = scmp.eq.s32.totalorder %s28, 0
      %p139 = por %p137, %p138
      %s141 = sadd.s32 %s140, 1
      %p144 = scmp.eq.s32.totalorder %s22, 1
      %p145 = scmp.ne.s32.totalorder %s140, %s142
      %p146 = scmp.eq.s32.totalorder %s22, 0
      %p147 = por %p145, %p146
      %p148 = scmp.ne.s32.totalorder %s140, %s142
      %p149 = scmp.eq.s32.totalorder %s27, 1
      %p150 = por %p148, %p149
      %p151 = scmp.ne.s32.totalorder %s142, %s143
      %p152 = scmp.eq.s32.totalorder %s27, 0
      %p153 = por %p151, %p152
      %p154 = scmp.ne.s32.totalorder %s142, %s143
      %p155 = scmp.eq.s32.totalorder %s28, 1
      %p156 = por %p154, %p155
      %p158 = scmp.ne.s32.totalorder %s143, %s157
      %p159 = scmp.eq.s32.totalorder %s28, 0
      %p160 = por %p158, %p159
      %s161 = ssub.s32 %s22, %s29
      %p162 = scmp.eq.s32.totalorder %s161, 0
      %s164 = sadd.s32 %s163, 1
      %s165 = scalar_select %p162, %s163, %s164
      %p168 = pneg %p162
      %p169 = scmp.eq.s32.totalorder %s22, 1
      %p170 = por %p168, %p169
      %p171 = scmp.ne.s32.totalorder %s163, %s166
      %p172 = scmp.eq.s32.totalorder %s22, 0
      %p173 = por %p171, %p172
      %p174 = scmp.ne.s32.totalorder %s163, %s166
      %p175 = scmp.eq.s32.totalorder %s27, 1
      %p176 = por %p174, %p175
      %p177 = scmp.ne.s32.totalorder %s166, %s167
      %p178 = scmp.eq.s32.totalorder %s27, 0
      %p179 = por %p177, %p178
      %p180 = scmp.ne.s32.totalorder %s166, %s167
      %p181 = scmp.eq.s32.totalorder %s28, 1
      %p182 = por %p180, %p181
      %p184 = scmp.ne.s32.totalorder %s167, %s183
      %p185 = scmp.eq.s32.totalorder %s28, 0
      %p186 = por %p184, %p185
      %p187 = scmp.le.s32.totalorder 1, %s22
      %p188 = scmp.lt.s32.totalorder %s22, 3
      %p189 = pnand %p187, %p188
      %p190 = pneg %p189
      // Predicated region
      $region9: #{tpu_custom_call.1} parent=5 // pred_check
        _
      $region10: #{tpu_custom_call.1} parent=5 // pred_check_branch
        %192 = sbr.rel (%p189) target = $region12
      $region11: #{tpu_custom_call.1} parent=5 // pred_region
        %s193 = ssub.s32 %s22, 1
        // Predicated region
        $region13: #{tpu_custom_call.1} parent=11 // pred_check
          %p194 = pneg %p43
        $region14: #{tpu_custom_call.1} parent=11 // pred_check_branch
          %196 = sbr.rel (%p194) target = $region16
        $region15: #{tpu_custom_call.1} parent=11 // pred_region
          _
        $region16: #{tpu_custom_call.1} parent=11 // pred_fallthru
          _
        // Predicated region
        $region17: #{tpu_custom_call.1} parent=11 // pred_check
          %p197 = pneg %p64
        $region18: #{tpu_custom_call.1} parent=11 // pred_check_branch
          %199 = sbr.rel (%p197) target = $region20
        $region19: #{tpu_custom_call.1} parent=11 // pred_region
          _
        $region20: #{tpu_custom_call.1} parent=11 // pred_fallthru
          _
        // Predicated region
        $region21: #{tpu_custom_call.1} parent=11 // pred_check
          %p200 = pneg %p85
        $region22: #{tpu_custom_call.1} parent=11 // pred_check_branch
          %202 = sbr.rel (%p200) target = $region24
        $region23: #{tpu_custom_call.1} parent=11 // pred_region
          _
        $region24: #{tpu_custom_call.1} parent=11 // pred_fallthru
          _
        // Predicated region
        $region25: #{tpu_custom_call.1} parent=11 // pred_check
          %p203 = pneg %p132
        $region26: #{tpu_custom_call.1} parent=11 // pred_check_branch
          %205 = sbr.rel (%p203) target = $region28
        $region27: #{tpu_custom_call.1} parent=11 // pred_region
          %s207 = ssub.s32 2048, 2048
          %208 = vsyncadd [#allocation9], %s207
          %s209 = sshll.u32 [#allocation8], 4
          %s210 = int_to_ptr.vmem [resolvable:$true] %s209
          %215 = dma.hbm_to_vmem [thread:$0]  %s4, 2048, %s210, [#allocation9], 128, 128, 8
        $region28: #{tpu_custom_call.1} parent=11 // pred_fallthru
          _
        // Predicated region
        $region29: #{tpu_custom_call.1} parent=11 // pred_check
          %p216 = pneg %p153
        $region30: #{tpu_custom_call.1} parent=11 // pred_check_branch
          %218 = sbr.rel (%p216) target = $region32
        $region31: #{tpu_custom_call.1} parent=11 // pred_region
          _
        $region32: #{tpu_custom_call.1} parent=11 // pred_fallthru
          _
      $region12: #{tpu_custom_call.1} parent=5 // pred_fallthru
        _
      %p219 = scmp.lt.s32.totalorder %s22, 2
      // Predicated region
      $region33: #{tpu_custom_call.1} parent=5 // pred_check
        %p220 = pneg %p219
      $region34: #{tpu_custom_call.1} parent=5 // pred_check_branch
        %222 = sbr.rel (%p220) target = $region36
      $region35: #{tpu_custom_call.1} parent=5 // pred_region
        // Predicated region
        $region37: #{tpu_custom_call.1} parent=35 // pred_check
          %p223 = pneg %p105
        $region38: #{tpu_custom_call.1} parent=35 // pred_check_branch
          %225 = sbr.rel (%p223) target = $region40
        $region39: #{tpu_custom_call.1} parent=35 // pred_region
          %s226 = sand.u32 %s95, 1
          %s227 = scalar_lea.sflag [#allocation6], %s226
          %s228 = sand.u32 %s95, 1
          %s229 = smul.addr %s228, 4
          %s230 = scalar_lea.vmem [#allocation5], %s229
          %s232 = ssub.s32 64, 64
          %233 = vsyncadd %s227, %s232
          %s234 = smul.addr %s22, 64
          %s235 = scalar_lea.hbm %s3, %s234
          %s237 = sshll.u32 %s230, 4
          %s238 = int_to_ptr.vmem [resolvable:$true] %s237
          %240 = dma.hbm_to_vmem [thread:$0]  %s235, 64, %s238, %s227
        $region40: #{tpu_custom_call.1} parent=35 // pred_fallthru
          _
      $region36: #{tpu_custom_call.1} parent=5 // pred_fallthru
        _
      %p241 = scmp.le.s32.totalorder 1, %s22
      %p242 = scmp.lt.s32.totalorder %s22, 3
      %p243 = pnand %p241, %p242
      %p244 = pneg %p243
      // Predicated region
      $region41: #{tpu_custom_call.1} parent=5 // pred_check
        _
      $region42: #{tpu_custom_call.1} parent=5 // pred_check_branch
        %246 = sbr.rel (%p243) target = $region44
      $region43: #{tpu_custom_call.1} parent=5 // pred_region
        %s247 = ssub.s32 %s22, 1
        %s248 = sand.u32 %s98, 1
        %s249 = scalar_lea.sflag [#allocation6], %s248
        %s250 = sand.u32 %s98, 1
        %s251 = smul.addr %s250, 4
        %s252 = scalar_lea.vmem [#allocation5], %s251
        // Predicated region
        $region45: #{tpu_custom_call.1} parent=43 // pred_check
          %p253 = pneg %p111
        $region46: #{tpu_custom_call.1} parent=43 // pred_check_branch
          %255 = sbr.rel (%p253) target = $region48
        $region47: #{tpu_custom_call.1} parent=43 // pred_region
          %256 = dma.done %s249, 64
        $region48: #{tpu_custom_call.1} parent=43 // pred_fallthru
          _
        // Predicated region
        $region49: #{tpu_custom_call.1} parent=43 // pred_check
          %p257 = pneg %p132
        $region50: #{tpu_custom_call.1} parent=43 // pred_check_branch
          %259 = sbr.rel (%p257) target = $region52
        $region51: #{tpu_custom_call.1} parent=43 // pred_region
          %260 = dma.done [#allocation9], 2048
        $region52: #{tpu_custom_call.1} parent=43 // pred_fallthru
          _
        %p261 = pneg %p43
        %p262 = pneg %p40
        %p263 = pneg %p64
        %p264 = pneg %p61
        %p265 = pneg %p85
        %p266 = pneg %p82
        %s267 = sand.u32 %s98, 1
        %s268 = scalar_lea.sflag [#allocation6], %s267
        %s269 = sand.u32 %s98, 1
        %s270 = smul.addr %s269, 4
        %s271 = scalar_lea.vmem [#allocation5], %s270
        %p272 = pneg %p111
        %p273 = pneg %p108
        %p274 = pneg %p132
        %p275 = pneg %p129
        %p276 = pneg %p153
        %p277 = pneg %p150
        %p278 = pneg %p179
        %p279 = pneg %p176
        %s280 = sand.u32 %s166, 1
        %s281 = scalar_lea.sflag [#allocation7], %s280
        %s282 = sand.u32 %s166, 1
        %s283 = smul.addr %s282, 8
        %s284 = scalar_lea.vmem [#allocation10], %s283
        %v286 = vld [vmem:[%s252] sm:$0xf]
        %v287 = vld [vmem:[#allocation8] sm:$0xff]
        %v288 = vld [vmem:[#allocation8 + $0x8] sm:$0xff]
        %v289 = vld [vmem:[#allocation8 + $0x10] sm:$0xff]
        %v290 = vld [vmem:[#allocation8 + $0x18] sm:$0xff]
        %v291 = vld [vmem:[#allocation8 + $0x20] sm:$0xff]
        %v292 = vld [vmem:[#allocation8 + $0x28] sm:$0xff]
        %v293 = vld [vmem:[#allocation8 + $0x30] sm:$0xff]
        %v294 = vld [vmem:[#allocation8 + $0x38] sm:$0xff]
        %v295 = vld [vmem:[#allocation8 + $0x40] sm:$0xff]
        %v296 = vld [vmem:[#allocation8 + $0x48] sm:$0xff]
        %v297 = vld [vmem:[#allocation8 + $0x50] sm:$0xff]
        %v298 = vld [vmem:[#allocation8 + $0x58] sm:$0xff]
        %v299 = vld [vmem:[#allocation8 + $0x60] sm:$0xff]
        %v300 = vld [vmem:[#allocation8 + $0x68] sm:$0xff]
        %v301 = vld [vmem:[#allocation8 + $0x70] sm:$0xff]
        %v302 = vld [vmem:[#allocation8 + $0x78] sm:$0xff]
        %v303 = vld [vmem:[%s5] sm:$0x3]
        %v305 = vlaneseq
        %v306 = vshrl.u32 %v305, 7
        %v307 = vsub.s32 0, %v306
        %v308 = vrot.slane %v303, %v307
        %v309 = vlaneseq
        %v310 = vshrl.u32 %v309, 7
        %v311 = vsub.s32 1, %v310
        %v312 = vrot.slane %v303, %v311
        %v331 = vunpack.c.l.b16 %v287
        %v332 = vunpack.c.h.b16 %v287
        %v333 = vunpack.c.l.b16 %v288
        %v334 = vunpack.c.h.b16 %v288
        %v335 = vunpack.c.l.b16 %v289
        %v336 = vunpack.c.h.b16 %v289
        %v337 = vunpack.c.l.b16 %v290
        %v338 = vunpack.c.h.b16 %v290
        %v339 = vunpack.c.l.b16 %v291
        %v340 = vunpack.c.h.b16 %v291
        %v341 = vunpack.c.l.b16 %v292
        %v342 = vunpack.c.h.b16 %v292
        %v343 = vunpack.c.l.b16 %v293
        %v344 = vunpack.c.h.b16 %v293
        %v345 = vunpack.c.l.b16 %v294
        %v346 = vunpack.c.h.b16 %v294
        %v347 = vunpack.c.l.b16 %v295
        %v348 = vunpack.c.h.b16 %v295
        %v349 = vunpack.c.l.b16 %v296
        %v350 = vunpack.c.h.b16 %v296
        %v351 = vunpack.c.l.b16 %v297
        %v352 = vunpack.c.h.b16 %v297
        %v353 = vunpack.c.l.b16 %v298
        %v354 = vunpack.c.h.b16 %v298
        %v355 = vunpack.c.l.b16 %v299
        %v356 = vunpack.c.h.b16 %v299
        %v357 = vunpack.c.l.b16 %v300
        %v358 = vunpack.c.h.b16 %v300
        %v359 = vunpack.c.l.b16 %v301
        %v360 = vunpack.c.h.b16 %v301
        %v361 = vunpack.c.l.b16 %v302
        %v362 = vunpack.c.h.b16 %v302
        %v363 = vpack.c.b16 %v333, %v331
        %v364 = vpack.c.b16 %v334, %v332
        %v365 = vpack.c.b16 %v337, %v335
        %v366 = vpack.c.b16 %v338, %v336
        %v367 = vpack.c.b16 %v341, %v339
        %v368 = vpack.c.b16 %v342, %v340
        %v369 = vpack.c.b16 %v345, %v343
        %v370 = vpack.c.b16 %v346, %v344
        %v371 = vpack.c.b16 %v349, %v347
        %v372 = vpack.c.b16 %v350, %v348
        %v373 = vpack.c.b16 %v353, %v351
        %v374 = vpack.c.b16 %v354, %v352
        %v375 = vpack.c.b16 %v357, %v355
        %v376 = vpack.c.b16 %v358, %v356
        %v377 = vpack.c.b16 %v361, %v359
        %v378 = vpack.c.b16 %v362, %v360
        %395 = vmatprep.subr.bf16.mxu0 %v378
        %396 = vmatpush1.bf16.msra.mxu0 %v377
        %397 = vmatprep.subr.bf16.mxu0 %v376
        %398 = vmatpush1.bf16.msra.mxu0 %v375
        %399 = vmatprep.subr.bf16.mxu0 %v374
        %400 = vmatpush1.bf16.msra.mxu0 %v373
        %401 = vmatprep.subr.bf16.mxu0 %v372
        %402 = vmatpush1.bf16.msra.mxu0 %v371
        %403 = vmatprep.subr.bf16.mxu0 %v370
        %404 = vmatpush1.bf16.msra.mxu0 %v369
        %405 = vmatprep.subr.bf16.mxu0 %v368
        %406 = vmatpush1.bf16.msra.mxu0 %v367
        %407 = vmatprep.subr.bf16.mxu0 %v366
        %408 = vmatpush1.bf16.msra.mxu0 %v365
        %409 = vmatprep.subr.bf16.mxu0 %v364
        %410 = vmatpush1.bf16.msra.mxu0 %v363
        %411 = vmatprep.subr.bf16.mxu0 0
        %412 = vmatpush2.bf16.msra.mxu0 0
        %413 = vmatprep.subr.bf16.mxu0 0
        %414 = vmatpush2.bf16.msra.mxu0 0
        %415 = vmatprep.subr.bf16.mxu0 0
        %416 = vmatpush2.bf16.msra.mxu0 0
        %417 = vmatprep.subr.bf16.mxu0 0
        %418 = vmatpush2.bf16.msra.mxu0 0
        %419 = vmatprep.subr.bf16.mxu0 0
        %420 = vmatpush2.bf16.msra.mxu0 0
        %421 = vmatprep.subr.bf16.mxu0 0
        %422 = vmatpush2.bf16.msra.mxu0 0
        %423 = vmatprep.subr.bf16.mxu0 0
        %424 = vmatpush2.bf16.msra.mxu0 0
        %425 = vmatprep.subr.bf16.mxu0 0
        %426 = vmatpush2.bf16.msra.mxu0 0
        %427 = vmatprep.mubr.bf16.mxu0 0
        %428 = vmatmul.mubr.bf16.gmra.mxu0 %v286
        %v429 = vpop.f32.mrf.mxu0
        %v430 = vadd.f32 %v308, %v429
        %v431 = vpop.f32.mrf.mxu0
        %v432 = vadd.f32 %v312, %v431
        %v433 = vpop.f32.mrf.mxu0
        %v434 = vpop.f32.mrf.mxu0
        %435 = vdwg.mxu0
        %v436 = vpack.c.bf16 %v430, %v430
        %v437 = vpack.c.bf16 %v432, %v432
        %v440 = vunpack.c.l.b16 %v436
        %v441 = vunpack.c.l.b16 %v437
        %v442 = vpack.c.b16 %v441, %v440
        %444 = vst [vmem:[%s284] sm:$0xff] %v442
        %s445 = sand.u32 %s166, 1
        %s446 = scalar_lea.sflag [#allocation7], %s445
        %s447 = sand.u32 %s166, 1
        %s448 = smul.addr %s447, 8
        %s449 = scalar_lea.vmem [#allocation10], %s448
        // Predicated region
        $region53: #{tpu_custom_call.1} parent=43 // pred_check
          %p450 = pneg %p176
        $region54: #{tpu_custom_call.1} parent=43 // pred_check_branch
          %452 = sbr.rel (%p450) target = $region56
        $region55: #{tpu_custom_call.1} parent=43 // pred_region
          %s454 = ssub.s32 128, 128
          %455 = vsyncadd %s446, %s454
          %s456 = smul.addr %s27, 2
          %s457 = smul.addr %s456, 64
          %s458 = scalar_lea.hbm %s6, %s457
          %s460 = sshll.u32 %s449, 4
          %s461 = int_to_ptr.vmem [resolvable:$true] %s460
          %463 = dma.vmem_to_hbm [thread:$0]  %s461, 128, %s458, %s446
        $region56: #{tpu_custom_call.1} parent=43 // pred_fallthru
          _
      $region44: #{tpu_custom_call.1} parent=5 // pred_fallthru
        _
      %p464 = scmp.le.s32.totalorder 2, %s22
      // Predicated region
      $region57: #{tpu_custom_call.1} parent=5 // pred_check
        %p465 = pneg %p464
      $region58: #{tpu_custom_call.1} parent=5 // pred_check_branch
        %467 = sbr.rel (%p465) target = $region60
      $region59: #{tpu_custom_call.1} parent=5 // pred_region
        %s468 = ssub.s32 %s22, 2
        // Predicated region
        $region61: #{tpu_custom_call.1} parent=59 // pred_check
          %p469 = pneg %p182
        $region62: #{tpu_custom_call.1} parent=59 // pred_check_branch
          %471 = sbr.rel (%p469) target = $region64
        $region63: #{tpu_custom_call.1} parent=59 // pred_region
          %s472 = sand.u32 %s167, 1
          %s473 = scalar_lea.sflag [#allocation7], %s472
          %s474 = sand.u32 %s167, 1
          %s475 = smul.addr %s474, 8
          %s476 = scalar_lea.vmem [#allocation10], %s475
          %477 = dma.done %s473, 128
        $region64: #{tpu_custom_call.1} parent=59 // pred_fallthru
          _
      $region60: #{tpu_custom_call.1} parent=5 // pred_fallthru
        _
    $region6: #{tpu_custom_call.1} parent=1 // loop_footer
      %s26 = sadd.s32 1, %s22
    $region7: #{tpu_custom_call.1} parent=1 // loop_footer_branch
      %21 = sbr.rel target = $region3
    $region8: #{tpu_custom_call.1} parent=1 // loop_exit
      _
    %478 = vsyncpa [#allocation6], 1
    %s479 = scalar_lea.sflag [#allocation6], 1
    %480 = vsyncpa %s479, 1
    %481 = vsyncpa [#allocation9], 1
    %482 = vsyncpa [#allocation7], 1
    %s483 = scalar_lea.sflag [#allocation7], 1
    %484 = vsyncpa %s483, 1

</llo_original>
